<compile_context>
chip_gen: v7x
topology: tpu7x:2x2x1
jax: 0.10.0
libtpu: 0.0.40
codegen_flags: <defaults>
</compile_context>

<pallas_src>
import jax
import jax.numpy as jnp
import numpy as np
from jax.experimental import pallas as pl
from jax.experimental.pallas import tpu as pltpu


def _stable_tanh_kernel(x_ref, sc_ref, inv_ref, o_ref):
    # x_ref:   (TB, TF) input tile
    # sc_ref:  (1, TF)  softplus(scale)        -- tiny, broadcast over rows
    # inv_ref: (1, TF)  1 / softplus(scale)
    x = x_ref[...].astype(jnp.float32)
    # tanh is the only per-element transcendental (EUP); scale mults are VPU work.
    o_ref[...] = (jnp.tanh(x * inv_ref[...]) * sc_ref[...]).astype(o_ref.dtype)


def multivar_stable_tanh(x, scale_factors, *,
                         target_block_bytes=6 * 1024 * 1024,
                         vmem_limit_bytes=48 * 1024 * 1024):
    """x: (B, E, D); scale_factors: (E, D). Returns (B, E, D) with the same dtype as x."""
    B, E, D = x.shape
    assert scale_factors.shape == (E, D)
    F = E * D

    # Lane-dense layout: collapse the per-network feature axes into the lane axis.
    # (Trailing-dim collapse -> no data movement.)
    x2 = x.reshape(B, F)

    # One-time (E*D)-sized pre-pass on the parameter: softplus + reciprocal.
    sc = jax.nn.softplus(scale_factors.astype(jnp.float32)).reshape(1, F)
    inv = jnp.float32(1.0) / sc

    itemsize = int(jnp.dtype(x.dtype).itemsize)
    # Packed-sublane size for this dtype: 8 rows (f32), 16 (bf16), 32 (int8/fp8).
    sublane = 8 * max(1, 4 // itemsize)

    # ---- Feature tile ------------------------------------------------------
    # If even a minimum-height block at full width blows the block budget,
    # give F its own (128-multiple) grid axis instead of an unbounded block.
    min_block_bytes = F * itemsize * sublane
    if min_block_bytes > target_block_bytes and F % 128 == 0:
        tf = (target_block_bytes // (itemsize * sublane * 128)) * 128
        tf = int(min(max(tf, 128), F))
    else:
        tf = F  # block width == full array dim -> tiling rule satisfied
        # TODO(synk): for huge F that is not a 128-multiple, add a one-time lane pad
        # of sc/inv/x instead of a full-width block.

    # ---- Batch tile --------------------------------------------------------
    rows_for_target = max(1, target_block_bytes // (tf * itemsize))
    if B >= sublane:
        tb = int(min(B, rows_for_target))
        tb = max(sublane, (tb // sublane) * sublane)
    else:
        tb = B  # block row-dim == full array dim -> tiling rule satisfied

    grid = (pl.cdiv(B, tb), pl.cdiv(F, tf))

    out = pl.pallas_call(
        _stable_tanh_kernel,
        out_shape=jax.ShapeDtypeStruct((B, F), x.dtype),
        grid_spec=pltpu.PrefetchScalarGridSpec(
            num_scalar_prefetch=0,
            grid=grid,
            in_specs=[
                pl.BlockSpec((tb, tf), lambda b, f: (b, f)),   # streaming input tile
                pl.BlockSpec((1, tf), lambda b, f: (0, f)),    # softplus(scale)
                pl.BlockSpec((1, tf), lambda b, f: (0, f)),    # 1/softplus(scale)
            ],
            out_specs=pl.BlockSpec((tb, tf), lambda b, f: (b, f)),
        ),
        compiler_params=pltpu.CompilerParams(
            # All tiles are independent elementwise work -> megacore-friendly.
            dimension_semantics=("parallel", "parallel"),
            vmem_limit_bytes=vmem_limit_bytes,
        ),
    )(x2, sc, inv)

    return out.reshape(B, E, D)


def make_scale_factors(input_dims, extra_dims, init_bias=0.0, dtype=jnp.float32):
    """Deterministic parameter init matching the PyTorch __init__:
    torch.zeros(prod(extra_dims), input_dims).fill_(init_bias)."""
    e = int(np.prod(extra_dims))
    return jnp.full((e, input_dims), init_bias, dtype=dtype)


if __name__ == "__main__":
    # Small shapes consistent with the module: batch=2, extra_dims=[4], input_dims=32.
    B, E, D = 2, 4, 32
    init_bias = 0.5

    key = jax.random.PRNGKey(0)
    x = jax.random.normal(key, (B, E, D), dtype=jnp.float32)

    scale_factors = make_scale_factors(input_dims=D, extra_dims=[E], init_bias=init_bias)

    out = multivar_stable_tanh(x, scale_factors)
    out = jax.block_until_ready(out)

    # Pure-JAX reference check (same math as the PyTorch forward).
    sc_ref = jax.nn.softplus(scale_factors)[None]
    ref = jnp.tanh(x / sc_ref) * sc_ref
    np.testing.assert_allclose(np.asarray(out), np.asarray(ref), rtol=1e-5, atol=1e-5)

    print("KERNEL_OK")
</pallas_src>

<mosaic_0001>
module attributes {stable_mosaic.version = 11 : i64} {
  func.func @_stable_tanh_kernel(%arg0: i32, %arg1: i32, %arg2: memref<2x128xf32, #tpu.memory_space<vmem>>, %arg3: memref<1x128xf32, #tpu.memory_space<vmem>>, %arg4: memref<1x128xf32, #tpu.memory_space<vmem>>, %arg5: memref<2x128xf32, #tpu.memory_space<vmem>>) attributes {dimension_semantics = [#tpu.dimension_semantics<parallel>, #tpu.dimension_semantics<parallel>], iteration_bounds = array<i64: 1, 1>, scalar_prefetch = 0 : i64, scratch_operands = 0 : i64, tpu.core_type = #tpu.core_type<tc>, window_params = [{transform_indices = @transform_0, window_bounds = array<i64: 2, 128>}, {transform_indices = @transform_1, window_bounds = array<i64: 1, 128>}, {transform_indices = @transform_2, window_bounds = array<i64: 1, 128>}, {transform_indices = @transform_3, window_bounds = array<i64: 2, 128>}]} {
    %c0 = arith.constant 0 : index
    %c0_0 = arith.constant 0 : index
    %0 = vector.load %arg2[%c0, %c0_0] : memref<2x128xf32, #tpu.memory_space<vmem>>, vector<2x128xf32>
    %c0_1 = arith.constant 0 : index
    %c0_2 = arith.constant 0 : index
    %1 = vector.load %arg4[%c0_1, %c0_2] : memref<1x128xf32, #tpu.memory_space<vmem>>, vector<1x128xf32>
    %2 = vector.broadcast %1 : vector<1x128xf32> to vector<2x128xf32>
    %3 = arith.mulf %0, %2 : vector<2x128xf32>
    %4 = math.tanh %3 : vector<2x128xf32>
    %c0_3 = arith.constant 0 : index
    %c0_4 = arith.constant 0 : index
    %5 = vector.load %arg3[%c0_3, %c0_4] : memref<1x128xf32, #tpu.memory_space<vmem>>, vector<1x128xf32>
    %6 = vector.broadcast %5 : vector<1x128xf32> to vector<2x128xf32>
    %7 = arith.mulf %4, %6 : vector<2x128xf32>
    %c0_5 = arith.constant 0 : index
    %c0_6 = arith.constant 0 : index
    %8 = vector.load %arg5[%c0_5, %c0_6] : memref<2x128xf32, #tpu.memory_space<vmem>>, vector<2x128xf32>
    tpu.vector_store %arg5[%c0_5, %c0_6], %7 {strides = array<i32>} : memref<2x128xf32, #tpu.memory_space<vmem>>, vector<2x128xf32>,
    return
  }
  func.func @transform_0(%arg0: i32, %arg1: i32) -> (i32, i32) {
    %c0_i32 = arith.constant 0 : i32
    return %arg0, %arg1 : i32, i32
  }
  func.func @transform_1(%arg0: i32, %arg1: i32) -> (i32, i32) {
    %c0_i32 = arith.constant 0 : i32
    %c0_i32_0 = arith.constant 0 : i32
    return %c0_i32, %arg1 : i32, i32
  }
  func.func @transform_2(%arg0: i32, %arg1: i32) -> (i32, i32) {
    %c0_i32 = arith.constant 0 : i32
    %c0_i32_0 = arith.constant 0 : i32
    return %c0_i32, %arg1 : i32, i32
  }
  func.func @transform_3(%arg0: i32, %arg1: i32) -> (i32, i32) {
    %c0_i32 = arith.constant 0 : i32
    return %arg0, %arg1 : i32, i32
  }
}

</mosaic_0001>

<llo_original>
// kernel: tpu_custom_call.1
$region0: #{tpu_custom_call.1}
  #allocation0 [shape = 'u32[]', space=smem, size = 0x4, offset = 0x4, fixed_abs, tag = 'smem constant byte address 0x4 - core index']
  #allocation1 [shape = 'u32[144,128]{1,0:T(1,128)}', space=vmem, size = 0x12000, scoped, tag = 'internal scratch']
  %s0 = inlined_call_operand.hbm [shape: f32[2,128], index: 0, kind: input, shape index: {}]
  %s1 = inlined_call_operand.vmem [shape: f32[1,128], index: 1, kind: input, shape index: {}]
  %s2 = inlined_call_operand.vmem [shape: f32[1,128], index: 2, kind: input, shape index: {}]
  %s3 = inlined_call_operand.hbm [shape: f32[2,128], index: 3, kind: output, shape index: {}]
  %s4 = sld [smem:[#allocation0]]
  $region26: #{tpu_custom_call.1} parent=0
    _
  %s6 = ssub.s32 1, %s4
  %s7 = scalar_select 0, %s6, %s4
  $region1: #{tpu_custom_call.1} parent=0
    #allocation2 [shape = 'u8[1024]{0}', space=vmem, size = 0x400, scoped, tag = 'input window, operand 0, single buffered']
    #allocation3 [shape = 's32[1]{0}', space=sflag, size = 0x4, scoped, tag = 'scoped memory for tpu_custom_call.1']
    #allocation4 [shape = 's32[1]{0}', space=sflag, size = 0x4, scoped, tag = 'scoped memory for tpu_custom_call.1']
    #allocation5 [shape = 'u8[1024]{0}', space=vmem, size = 0x400, scoped, tag = 'output window, operand 0, single buffered']
    %8 = vsyncpa [#allocation3], 0
    %9 = vsyncpa [#allocation4], 0
    // Predicated region
    $region2: #{tpu_custom_call.1} parent=1 // pred_check
      _
    $region3: #{tpu_custom_call.1} parent=1 // pred_check_branch
      %11 = sbr.rel (0) target = $region5
    $region4: #{tpu_custom_call.1} parent=1 // pred_region
      %s13 = ssub.s32 32, 32
      %14 = vsyncadd [#allocation3], %s13
      %s16 = sshll.u32 [#allocation2], 4
      %s17 = int_to_ptr.vmem [resolvable:$true] %s16
      %19 = dma.hbm_to_vmem [thread:$0]  %s0, 32, %s17, [#allocation3]
    $region5: #{tpu_custom_call.1} parent=1 // pred_fallthru
      _
    // Predicated region
    $region6: #{tpu_custom_call.1} parent=1 // pred_check
      _
    $region7: #{tpu_custom_call.1} parent=1 // pred_check_branch
      %21 = sbr.rel (0) target = $region9
    $region8: #{tpu_custom_call.1} parent=1 // pred_region
      _
    $region9: #{tpu_custom_call.1} parent=1 // pred_fallthru
      _
    // Predicated region
    $region10: #{tpu_custom_call.1} parent=1 // pred_check
      _
    $region11: #{tpu_custom_call.1} parent=1 // pred_check_branch
      %23 = sbr.rel (0) target = $region13
    $region12: #{tpu_custom_call.1} parent=1 // pred_region
      _
    $region13: #{tpu_custom_call.1} parent=1 // pred_fallthru
      _
    // Predicated region
    $region14: #{tpu_custom_call.1} parent=1 // pred_check
      _
    $region15: #{tpu_custom_call.1} parent=1 // pred_check_branch
      %25 = sbr.rel (0) target = $region17
    $region16: #{tpu_custom_call.1} parent=1 // pred_region
      %26 = dma.done [#allocation3], 32
    $region17: #{tpu_custom_call.1} parent=1 // pred_fallthru
      _
    %v27 = vld [vmem:[#allocation2] sm:$0x3]
    %v28 = vld [vmem:[%s2] sm:$0x1]
    %v30 = vlaneseq
    %v31 = vshrl.u32 %v30, 7
    %v32 = vsub.s32 0, %v31
    %v33 = vrot.slane %v28, %v32
    %v35 = vmul.f32 %v27, %v33
    %v36 = vtanh.pop %v35
    %v37 = vld [vmem:[%s1] sm:$0x1]
    %v39 = vlaneseq
    %v40 = vshrl.u32 %v39, 7
    %v41 = vsub.s32 0, %v40
    %v42 = vrot.slane %v37, %v41
    %v44 = vmul.f32 %v36, %v42
    %45 = vst [vmem:[#allocation5] sm:$0x3] %v44
    // Predicated region
    $region18: #{tpu_custom_call.1} parent=1 // pred_check
      _
    $region19: #{tpu_custom_call.1} parent=1 // pred_check_branch
      %47 = sbr.rel (0) target = $region21
    $region20: #{tpu_custom_call.1} parent=1 // pred_region
      %s49 = ssub.s32 32, 32
      %50 = vsyncadd [#allocation4], %s49
      %s52 = sshll.u32 [#allocation5], 4
      %s53 = int_to_ptr.vmem [resolvable:$true] %s52
      %55 = dma.vmem_to_hbm [thread:$0]  %s53, 32, %s3, [#allocation4]
    $region21: #{tpu_custom_call.1} parent=1 // pred_fallthru
      _
    // Predicated region
    $region22: #{tpu_custom_call.1} parent=1 // pred_check
      _
    $region23: #{tpu_custom_call.1} parent=1 // pred_check_branch
      %57 = sbr.rel (0) target = $region25
    $region24: #{tpu_custom_call.1} parent=1 // pred_region
      %58 = dma.done [#allocation4], 32
    $region25: #{tpu_custom_call.1} parent=1 // pred_fallthru
      _
    %59 = vsyncpa [#allocation3], 1
    %60 = vsyncpa [#allocation4], 1

</llo_original>
